<compile_context>
chip_gen: v7x
topology: tpu7x:2x2x1
jax: 0.10.0
libtpu: 0.0.40
codegen_flags: <defaults>
</compile_context>

<pallas_src>
import functools

import jax
import jax.numpy as jnp
from jax import lax
from jax.experimental import pallas as pl
from jax.experimental.pallas import tpu as pltpu

_LANES = 128  # lane width of one W-block (vreg lane count)


def _reverse_lanes(x):
    """Bit-exact reversal of the last (lane) axis of a (rows, 128) tile.

    log2(128) = 7 butterfly stages; stage k realises y[i] <- y[i ^ k] using two opposite lane
    rotations plus a select keyed off the *rotated lane index*, so the result is independent
    of the rotation direction convention and exact for every bit pattern (pure data movement
    on XLU/VPU slots, which have slack in this HBM-bound kernel).
    """
    axis = x.ndim - 1
    lane = lax.broadcasted_iota(jnp.int32, x.shape, axis)
    y = x
    for k in (1, 2, 4, 8, 16, 32, 64):
        fwd_y = pltpu.roll(y, shift=k, axis=axis)
        bwd_y = pltpu.roll(y, shift=_LANES - k, axis=axis)
        fwd_i = pltpu.roll(lane, shift=k, axis=axis)
        y = jnp.where(fwd_i == (lane ^ k), fwd_y, bwd_y)
    return y


def _paf_hflip_kernel(fi_ref, rv_ref, f0_ref, f1_ref, f2_ref,
                      o0_ref, o1_ref, o2_ref, *, H, CH):
    del fi_ref                                  # consumed by the gather index_maps
    reverse = rv_ref[pl.program_id(1)] != 0     # swap regression fields 1 <-> 2 for this paf?

    # Field 0 (paf intensities): gather (index_map) + horizontal flip only.
    o0_ref[...] = _reverse_lanes(f0_ref[...])

    # Fields 1/2 (paf regressions flattened to (C*H, 128) rows): flip, negate the x channel
    # (rows [0, H)), and swap the two fields for reverse-direction pafs on the way to the store.
    g1 = _reverse_lanes(f1_ref[...])
    g2 = _reverse_lanes(f2_ref[...])

    def store(a, b):
        o1_ref[0:H, :] = -a[0:H, :]
        o2_ref[0:H, :] = -b[0:H, :]
        if CH > H:                              # y (and any further) channels pass through
            o1_ref[H:, :] = a[H:, :]
            o2_ref[H:, :] = b[H:, :]

    @pl.when(reverse)
    def _():
        store(g2, g1)

    @pl.when(jnp.logical_not(reverse))
    def _():
        store(g1, g2)


def _paf_hflip_call(f0, f1r, f2r, flip_indices, reverse_flags):
    B, P, H, W = f0.shape                       # W is already a multiple of _LANES here
    CH = f1r.shape[2]
    nW = W // _LANES

    # Input W-blocks are fetched in reversed order (the DMA does most of the flip for free);
    # only the fixed intra-128-lane reverse remains in-kernel.
    gather = lambda b, p, w, fi, rv: (b, fi[p], 0, nW - 1 - w)
    scatter = lambda b, p, w, fi, rv: (b, p, 0, w)

    bytes_acc = 2 * (f0.size * f0.dtype.itemsize
                     + f1r.size * f1r.dtype.itemsize
                     + f2r.size * f2r.dtype.itemsize)
    flops = 2 * B * P * H * W                   # only the x-channel negations; mem-bound copy
    cost = pl.CostEstimate(flops=int(flops), transcendentals=0,
                           bytes_accessed=int(bytes_acc))

    return pl.pallas_call(
        functools.partial(_paf_hflip_kernel, H=H, CH=CH),
        out_shape=(jax.ShapeDtypeStruct((B, P, H, W), f0.dtype),
                   jax.ShapeDtypeStruct((B, P, CH, W), f1r.dtype),
                   jax.ShapeDtypeStruct((B, P, CH, W), f2r.dtype)),
        grid_spec=pltpu.PrefetchScalarGridSpec(
            num_scalar_prefetch=2,
            grid=(B, P, nW),
            in_specs=[
                pl.BlockSpec((None, None, H, _LANES), gather),
                pl.BlockSpec((None, None, CH, _LANES), gather),
                pl.BlockSpec((None, None, CH, _LANES), gather),
            ],
            out_specs=(
                pl.BlockSpec((None, None, H, _LANES), scatter),
                pl.BlockSpec((None, None, CH, _LANES), scatter),
                pl.BlockSpec((None, None, CH, _LANES), scatter),
            ),
        ),
        compiler_params=pltpu.CompilerParams(
            dimension_semantics=("parallel", "parallel", "parallel")),
        cost_estimate=cost,
    )(flip_indices, reverse_flags, f0, f1r, f2r)


@jax.jit
def _paf_hflip_forward(f0, f1, f2, flip_indices, reverse_flags):
    B, P, H, W = f0.shape
    _, _, C, _, _ = f1.shape
    assert f2.shape == f1.shape
    CH = C * H

    f1r = f1.reshape(B, P, CH, W)               # free metadata reshape (contiguous)
    f2r = f2.reshape(B, P, CH, W)

    pad = (-W) % _LANES
    if pad:
        # TODO(synk): for full lane density, pad W to a multiple of 128 at the producing layer
        # instead of paying this extra HBM pass here (typical pifpaf widths are 41-81).
        cfg = ((0, 0), (0, 0), (0, 0), (0, pad))
        f0, f1r, f2r = jnp.pad(f0, cfg), jnp.pad(f1r, cfg), jnp.pad(f2r, cfg)

    o0, o1, o2 = _paf_hflip_call(f0, f1r, f2r, flip_indices, reverse_flags)

    if pad:
        # flip(pad_right(x)) carries the real data in the trailing W columns.
        o0, o1, o2 = o0[..., pad:], o1[..., pad:], o2[..., pad:]
    return o0, o1.reshape(B, P, C, H, W), o2.reshape(B, P, C, H, W)


class PafHFlip:
    """JAX/Pallas analogue of openpifpaf's PafHFlip module (no learned weights)."""

    def __init__(self, keypoints, skeleton, hflip):
        skeleton_names = [(keypoints[j1 - 1], keypoints[j2 - 1]) for j1, j2 in skeleton]
        flipped_skeleton_names = [
            (hflip[j1] if j1 in hflip else j1, hflip[j2] if j2 in hflip else j2)
            for j1, j2 in skeleton_names]
        flip_indices = list(range(len(skeleton)))
        reverse_direction = []
        for paf_i, (n1, n2) in enumerate(skeleton_names):
            if (n1, n2) in flipped_skeleton_names:
                flip_indices[paf_i] = flipped_skeleton_names.index((n1, n2))
            if (n2, n1) in flipped_skeleton_names:
                flip_indices[paf_i] = flipped_skeleton_names.index((n2, n1))
                reverse_direction.append(paf_i)
        self.flip_indices_py = flip_indices
        self.reverse_direction_py = reverse_direction
        self.flip_indices = jnp.asarray(flip_indices, jnp.int32)
        self.reverse_flags = jnp.asarray(
            [1 if i in reverse_direction else 0 for i in range(len(skeleton))], jnp.int32)

    def __call__(self, paf_intensity, paf_reg1, paf_reg2):
        # TODO(synk): the PyTorch forward accepts a variadic number of trailing PAF fields
        # (spreads/scales); they would take the same gather+flip path without the x-negation.
        # Only the canonical 3-field call is implemented here.
        return _paf_hflip_forward(paf_intensity, paf_reg1, paf_reg2,
                                  self.flip_indices, self.reverse_flags)


if __name__ == "__main__":
    keypoints = ["nose", "left_shoulder", "right_shoulder", "left_hip", "right_hip"]
    hflip = {"left_shoulder": "right_shoulder", "right_shoulder": "left_shoulder",
             "left_hip": "right_hip", "right_hip": "left_hip"}
    skeleton = [[1, 2], [1, 3], [2, 4], [3, 5], [2, 3]]   # 1-based joint pairs

    module = PafHFlip(keypoints, skeleton, hflip)
    assert module.reverse_direction_py, "demo skeleton should exercise the swap path"
    P = len(skeleton)

    def reference(paf_c, paf_r1, paf_r2):
        # Pure-JAX reference of the PyTorch forward.
        fi = jnp.asarray(module.flip_indices_py, jnp.int32)
        r0 = jnp.flip(jnp.take(paf_c, fi, axis=1), axis=-1)
        r1 = jnp.flip(jnp.take(paf_r1, fi, axis=1), axis=-1)
        r2 = jnp.flip(jnp.take(paf_r2, fi, axis=1), axis=-1)
        r1 = r1.at[:, :, 0].multiply(-1.0)
        r2 = r2.at[:, :, 0].multiply(-1.0)
        for paf_i in module.reverse_direction_py:
            t = r1[:, paf_i]
            r1 = r1.at[:, paf_i].set(r2[:, paf_i])
            r2 = r2.at[:, paf_i].set(t)
        return r0, r1, r2

    key = jax.random.PRNGKey(0)
    # Case 1: lane-dense fast path (W % 128 == 0).  Case 2: padded fallback (pifpaf-like W).
    for (B, C, H, W) in ((2, 2, 8, 128), (1, 2, 8, 40)):
        key, k0, k1, k2 = jax.random.split(key, 4)
        paf_c = jax.random.uniform(k0, (B, P, H, W), jnp.float32)       # paf intensities
        paf_r1 = jax.random.normal(k1, (B, P, C, H, W), jnp.float32)    # regressions, joint 1
        paf_r2 = jax.random.normal(k2, (B, P, C, H, W), jnp.float32)    # regressions, joint 2

        o0, o1, o2 = module(paf_c, paf_r1, paf_r2)
        jax.block_until_ready((o0, o1, o2))

        r0, r1, r2 = reference(paf_c, paf_r1, paf_r2)
        assert o0.shape == r0.shape and o1.shape == r1.shape and o2.shape == r2.shape
        # The roll-butterfly flip and the negation are bit-exact => exact comparison.
        assert bool(jnp.array_equal(o0, r0)), ("field0 mismatch", (B, C, H, W))
        assert bool(jnp.array_equal(o1, r1)), ("field1 mismatch", (B, C, H, W))
        assert bool(jnp.array_equal(o2, r2)), ("field2 mismatch", (B, C, H, W))

    print("KERNEL_OK")
</pallas_src>

<mosaic_0001>
module attributes {stable_mosaic.version = 11 : i64} {
  func.func @_paf_hflip_kernel(%arg0: i32, %arg1: i32, %arg2: i32, %arg3: memref<5xi32, #tpu.memory_space<smem>>, %arg4: memref<5xi32, #tpu.memory_space<smem>>, %arg5: memref<1x1x8x128xf32, #tpu.memory_space<vmem>>, %arg6: memref<1x1x16x128xf32, #tpu.memory_space<vmem>>, %arg7: memref<1x1x16x128xf32, #tpu.memory_space<vmem>>, %arg8: memref<1x1x8x128xf32, #tpu.memory_space<vmem>>, %arg9: memref<1x1x16x128xf32, #tpu.memory_space<vmem>>, %arg10: memref<1x1x16x128xf32, #tpu.memory_space<vmem>>) attributes {dimension_semantics = [#tpu.dimension_semantics<parallel>, #tpu.dimension_semantics<parallel>, #tpu.dimension_semantics<parallel>], iteration_bounds = array<i64: 2, 5, 1>, scalar_prefetch = 2 : i64, scratch_operands = 0 : i64, tpu.core_type = #tpu.core_type<tc>, window_params = [{transform_indices = @transform_0, window_bounds = array<i64: 1, 1, 8, 128>}, {transform_indices = @transform_1, window_bounds = array<i64: 1, 1, 16, 128>}, {transform_indices = @transform_2, window_bounds = array<i64: 1, 1, 16, 128>}, {transform_indices = @transform_3, window_bounds = array<i64: 1, 1, 8, 128>}, {transform_indices = @transform_4, window_bounds = array<i64: 1, 1, 16, 128>}, {transform_indices = @transform_5, window_bounds = array<i64: 1, 1, 16, 128>}]} {
    %0 = arith.index_cast %arg1 : i32 to index
    %1 = memref.load %arg4[%0] : memref<5xi32, #tpu.memory_space<smem>>
    %c0_i32 = arith.constant 0 : i32
    %2 = arith.cmpi ne, %1, %c0_i32 : i32
    %c0 = arith.constant 0 : index
    %c0_0 = arith.constant 0 : index
    %c0_1 = arith.constant 0 : index
    %c0_2 = arith.constant 0 : index
    %3 = vector.load %arg5[%c0, %c0_0, %c0_1, %c0_2] : memref<1x1x8x128xf32, #tpu.memory_space<vmem>>, vector<1x1x8x128xf32>
    %4 = vector.shape_cast %3 : vector<1x1x8x128xf32> to vector<8x128xf32>
    %5 = tpu.iota {dimensions = array<i32: 1>} : vector<8x128xi32>
    %c1_i32 = arith.constant 1 : i32
    %6 = tpu.dynamic_rotate %4 by %c1_i32 dim 1 : vector<8x128xf32>, i32 -> vector<8x128xf32>
    %c127_i32 = arith.constant 127 : i32
    %7 = tpu.dynamic_rotate %4 by %c127_i32 dim 1 : vector<8x128xf32>, i32 -> vector<8x128xf32>
    %c1_i32_3 = arith.constant 1 : i32
    %8 = tpu.dynamic_rotate %5 by %c1_i32_3 dim 1 : vector<8x128xi32>, i32 -> vector<8x128xi32>
    %c1_i32_4 = arith.constant 1 : i32
    %9 = vector.broadcast %c1_i32_4 : i32 to vector<8x128xi32>
    %10 = arith.xori %5, %9 : vector<8x128xi32>
    %11 = arith.cmpi eq, %8, %10 : vector<8x128xi32>
    %12 = arith.select %11, %6, %7 : vector<8x128xi1>, vector<8x128xf32>
    %c2_i32 = arith.constant 2 : i32
    %13 = tpu.dynamic_rotate %12 by %c2_i32 dim 1 : vector<8x128xf32>, i32 -> vector<8x128xf32>
    %c126_i32 = arith.constant 126 : i32
    %14 = tpu.dynamic_rotate %12 by %c126_i32 dim 1 : vector<8x128xf32>, i32 -> vector<8x128xf32>
    %c2_i32_5 = arith.constant 2 : i32
    %15 = tpu.dynamic_rotate %5 by %c2_i32_5 dim 1 : vector<8x128xi32>, i32 -> vector<8x128xi32>
    %c2_i32_6 = arith.constant 2 : i32
    %16 = vector.broadcast %c2_i32_6 : i32 to vector<8x128xi32>
    %17 = arith.xori %5, %16 : vector<8x128xi32>
    %18 = arith.cmpi eq, %15, %17 : vector<8x128xi32>
    %19 = arith.select %18, %13, %14 : vector<8x128xi1>, vector<8x128xf32>
    %c4_i32 = arith.constant 4 : i32
    %20 = tpu.dynamic_rotate %19 by %c4_i32 dim 1 : vector<8x128xf32>, i32 -> vector<8x128xf32>
    %c124_i32 = arith.constant 124 : i32
    %21 = tpu.dynamic_rotate %19 by %c124_i32 dim 1 : vector<8x128xf32>, i32 -> vector<8x128xf32>
    %c4_i32_7 = arith.constant 4 : i32
    %22 = tpu.dynamic_rotate %5 by %c4_i32_7 dim 1 : vector<8x128xi32>, i32 -> vector<8x128xi32>
    %c4_i32_8 = arith.constant 4 : i32
    %23 = vector.broadcast %c4_i32_8 : i32 to vector<8x128xi32>
    %24 = arith.xori %5, %23 : vector<8x128xi32>
    %25 = arith.cmpi eq, %22, %24 : vector<8x128xi32>
    %26 = arith.select %25, %20, %21 : vector<8x128xi1>, vector<8x128xf32>
    %c8_i32 = arith.constant 8 : i32
    %27 = tpu.dynamic_rotate %26 by %c8_i32 dim 1 : vector<8x128xf32>, i32 -> vector<8x128xf32>
    %c120_i32 = arith.constant 120 : i32
    %28 = tpu.dynamic_rotate %26 by %c120_i32 dim 1 : vector<8x128xf32>, i32 -> vector<8x128xf32>
    %c8_i32_9 = arith.constant 8 : i32
    %29 = tpu.dynamic_rotate %5 by %c8_i32_9 dim 1 : vector<8x128xi32>, i32 -> vector<8x128xi32>
    %c8_i32_10 = arith.constant 8 : i32
    %30 = vector.broadcast %c8_i32_10 : i32 to vector<8x128xi32>
    %31 = arith.xori %5, %30 : vector<8x128xi32>
    %32 = arith.cmpi eq, %29, %31 : vector<8x128xi32>
    %33 = arith.select %32, %27, %28 : vector<8x128xi1>, vector<8x128xf32>
    %c16_i32 = arith.constant 16 : i32
    %34 = tpu.dynamic_rotate %33 by %c16_i32 dim 1 : vector<8x128xf32>, i32 -> vector<8x128xf32>
    %c112_i32 = arith.constant 112 : i32
    %35 = tpu.dynamic_rotate %33 by %c112_i32 dim 1 : vector<8x128xf32>, i32 -> vector<8x128xf32>
    %c16_i32_11 = arith.constant 16 : i32
    %36 = tpu.dynamic_rotate %5 by %c16_i32_11 dim 1 : vector<8x128xi32>, i32 -> vector<8x128xi32>
    %c16_i32_12 = arith.constant 16 : i32
    %37 = vector.broadcast %c16_i32_12 : i32 to vector<8x128xi32>
    %38 = arith.xori %5, %37 : vector<8x128xi32>
    %39 = arith.cmpi eq, %36, %38 : vector<8x128xi32>
    %40 = arith.select %39, %34, %35 : vector<8x128xi1>, vector<8x128xf32>
    %c32_i32 = arith.constant 32 : i32
    %41 = tpu.dynamic_rotate %40 by %c32_i32 dim 1 : vector<8x128xf32>, i32 -> vector<8x128xf32>
    %c96_i32 = arith.constant 96 : i32
    %42 = tpu.dynamic_rotate %40 by %c96_i32 dim 1 : vector<8x128xf32>, i32 -> vector<8x128xf32>
    %c32_i32_13 = arith.constant 32 : i32
    %43 = tpu.dynamic_rotate %5 by %c32_i32_13 dim 1 : vector<8x128xi32>, i32 -> vector<8x128xi32>
    %c32_i32_14 = arith.constant 32 : i32
    %44 = vector.broadcast %c32_i32_14 : i32 to vector<8x128xi32>
    %45 = arith.xori %5, %44 : vector<8x128xi32>
    %46 = arith.cmpi eq, %43, %45 : vector<8x128xi32>
    %47 = arith.select %46, %41, %42 : vector<8x128xi1>, vector<8x128xf32>
    %c64_i32 = arith.constant 64 : i32
    %48 = tpu.dynamic_rotate %47 by %c64_i32 dim 1 : vector<8x128xf32>, i32 -> vector<8x128xf32>
    %c64_i32_15 = arith.constant 64 : i32
    %49 = tpu.dynamic_rotate %47 by %c64_i32_15 dim 1 : vector<8x128xf32>, i32 -> vector<8x128xf32>
    %c64_i32_16 = arith.constant 64 : i32
    %50 = tpu.dynamic_rotate %5 by %c64_i32_16 dim 1 : vector<8x128xi32>, i32 -> vector<8x128xi32>
    %c64_i32_17 = arith.constant 64 : i32
    %51 = vector.broadcast %c64_i32_17 : i32 to vector<8x128xi32>
    %52 = arith.xori %5, %51 : vector<8x128xi32>
    %53 = arith.cmpi eq, %50, %52 : vector<8x128xi32>
    %54 = arith.select %53, %48, %49 : vector<8x128xi1>, vector<8x128xf32>
    %c0_18 = arith.constant 0 : index
    %c0_19 = arith.constant 0 : index
    %c0_20 = arith.constant 0 : index
    %c0_21 = arith.constant 0 : index
    %55 = vector.load %arg8[%c0_18, %c0_19, %c0_20, %c0_21] : memref<1x1x8x128xf32, #tpu.memory_space<vmem>>, vector<1x1x8x128xf32>
    %56 = vector.shape_cast %55 : vector<1x1x8x128xf32> to vector<8x128xf32>
    %57 = vector.shape_cast %54 : vector<8x128xf32> to vector<1x1x8x128xf32>
    tpu.vector_store %arg8[%c0_18, %c0_19, %c0_20, %c0_21], %57 {strides = array<i32>} : memref<1x1x8x128xf32, #tpu.memory_space<vmem>>, vector<1x1x8x128xf32>,
    %c0_22 = arith.constant 0 : index
    %c0_23 = arith.constant 0 : index
    %c0_24 = arith.constant 0 : index
    %c0_25 = arith.constant 0 : index
    %58 = vector.load %arg6[%c0_22, %c0_23, %c0_24, %c0_25] : memref<1x1x16x128xf32, #tpu.memory_space<vmem>>, vector<1x1x16x128xf32>
    %59 = vector.shape_cast %58 : vector<1x1x16x128xf32> to vector<16x128xf32>
    %60 = tpu.iota {dimensions = array<i32: 1>} : vector<16x128xi32>
    %c1_i32_26 = arith.constant 1 : i32
    %61 = tpu.dynamic_rotate %59 by %c1_i32_26 dim 1 : vector<16x128xf32>, i32 -> vector<16x128xf32>
    %c127_i32_27 = arith.constant 127 : i32
    %62 = tpu.dynamic_rotate %59 by %c127_i32_27 dim 1 : vector<16x128xf32>, i32 -> vector<16x128xf32>
    %c1_i32_28 = arith.constant 1 : i32
    %63 = tpu.dynamic_rotate %60 by %c1_i32_28 dim 1 : vector<16x128xi32>, i32 -> vector<16x128xi32>
    %c1_i32_29 = arith.constant 1 : i32
    %64 = vector.broadcast %c1_i32_29 : i32 to vector<16x128xi32>
    %65 = arith.xori %60, %64 : vector<16x128xi32>
    %66 = arith.cmpi eq, %63, %65 : vector<16x128xi32>
    %67 = arith.select %66, %61, %62 : vector<16x128xi1>, vector<16x128xf32>
    %c2_i32_30 = arith.constant 2 : i32
    %68 = tpu.dynamic_rotate %67 by %c2_i32_30 dim 1 : vector<16x128xf32>, i32 -> vector<16x128xf32>
    %c126_i32_31 = arith.constant 126 : i32
    %69 = tpu.dynamic_rotate %67 by %c126_i32_31 dim 1 : vector<16x128xf32>, i32 -> vector<16x128xf32>
    %c2_i32_32 = arith.constant 2 : i32
    %70 = tpu.dynamic_rotate %60 by %c2_i32_32 dim 1 : vector<16x128xi32>, i32 -> vector<16x128xi32>
    %c2_i32_33 = arith.constant 2 : i32
    %71 = vector.broadcast %c2_i32_33 : i32 to vector<16x128xi32>
    %72 = arith.xori %60, %71 : vector<16x128xi32>
    %73 = arith.cmpi eq, %70, %72 : vector<16x128xi32>
    %74 = arith.select %73, %68, %69 : vector<16x128xi1>, vector<16x128xf32>
    %c4_i32_34 = arith.constant 4 : i32
    %75 = tpu.dynamic_rotate %74 by %c4_i32_34 dim 1 : vector<16x128xf32>, i32 -> vector<16x128xf32>
    %c124_i32_35 = arith.constant 124 : i32
    %76 = tpu.dynamic_rotate %74 by %c124_i32_35 dim 1 : vector<16x128xf32>, i32 -> vector<16x128xf32>
    %c4_i32_36 = arith.constant 4 : i32
    %77 = tpu.dynamic_rotate %60 by %c4_i32_36 dim 1 : vector<16x128xi32>, i32 -> vector<16x128xi32>
    %c4_i32_37 = arith.constant 4 : i32
    %78 = vector.broadcast %c4_i32_37 : i32 to vector<16x128xi32>
    %79 = arith.xori %60, %78 : vector<16x128xi32>
    %80 = arith.cmpi eq, %77, %79 : vector<16x128xi32>
    %81 = arith.select %80, %75, %76 : vector<16x128xi1>, vector<16x128xf32>
    %c8_i32_38 = arith.constant 8 : i32
    %82 = tpu.dynamic_rotate %81 by %c8_i32_38 dim 1 : vector<16x128xf32>, i32 -> vector<16x128xf32>
    %c120_i32_39 = arith.constant 120 : i32
    %83 = tpu.dynamic_rotate %81 by %c120_i32_39 dim 1 : vector<16x128xf32>, i32 -> vector<16x128xf32>
    %c8_i32_40 = arith.constant 8 : i32
    %84 = tpu.dynamic_rotate %60 by %c8_i32_40 dim 1 : vector<16x128xi32>, i32 -> vector<16x128xi32>
    %c8_i32_41 = arith.constant 8 : i32
    %85 = vector.broadcast %c8_i32_41 : i32 to vector<16x128xi32>
    %86 = arith.xori %60, %85 : vector<16x128xi32>
    %87 = arith.cmpi eq, %84, %86 : vector<16x128xi32>
    %88 = arith.select %87, %82, %83 : vector<16x128xi1>, vector<16x128xf32>
    %c16_i32_42 = arith.constant 16 : i32
    %89 = tpu.dynamic_rotate %88 by %c16_i32_42 dim 1 : vector<16x128xf32>, i32 -> vector<16x128xf32>
    %c112_i32_43 = arith.constant 112 : i32
    %90 = tpu.dynamic_rotate %88 by %c112_i32_43 dim 1 : vector<16x128xf32>, i32 -> vector<16x128xf32>
    %c16_i32_44 = arith.constant 16 : i32
    %91 = tpu.dynamic_rotate %60 by %c16_i32_44 dim 1 : vector<16x128xi32>, i32 -> vector<16x128xi32>
    %c16_i32_45 = arith.constant 16 : i32
    %92 = vector.broadcast %c16_i32_45 : i32 to vector<16x128xi32>
    %93 = arith.xori %60, %92 : vector<16x128xi32>
    %94 = arith.cmpi eq, %91, %93 : vector<16x128xi32>
    %95 = arith.select %94, %89, %90 : vector<16x128xi1>, vector<16x128xf32>
    %c32_i32_46 = arith.constant 32 : i32
    %96 = tpu.dynamic_rotate %95 by %c32_i32_46 dim 1 : vector<16x128xf32>, i32 -> vector<16x128xf32>
    %c96_i32_47 = arith.constant 96 : i32
    %97 = tpu.dynamic_rotate %95 by %c96_i32_47 dim 1 : vector<16x128xf32>, i32 -> vector<16x128xf32>
    %c32_i32_48 = arith.constant 32 : i32
    %98 = tpu.dynamic_rotate %60 by %c32_i32_48 dim 1 : vector<16x128xi32>, i32 -> vector<16x128xi32>
    %c32_i32_49 = arith.constant 32 : i32
    %99 = vector.broadcast %c32_i32_49 : i32 to vector<16x128xi32>
    %100 = arith.xori %60, %99 : vector<16x128xi32>
    %101 = arith.cmpi eq, %98, %100 : vector<16x128xi32>
    %102 = arith.select %101, %96, %97 : vector<16x128xi1>, vector<16x128xf32>
    %c64_i32_50 = arith.constant 64 : i32
    %103 = tpu.dynamic_rotate %102 by %c64_i32_50 dim 1 : vector<16x128xf32>, i32 -> vector<16x128xf32>
    %c64_i32_51 = arith.constant 64 : i32
    %104 = tpu.dynamic_rotate %102 by %c64_i32_51 dim 1 : vector<16x128xf32>, i32 -> vector<16x128xf32>
    %c64_i32_52 = arith.constant 64 : i32
    %105 = tpu.dynamic_rotate %60 by %c64_i32_52 dim 1 : vector<16x128xi32>, i32 -> vector<16x128xi32>
    %c64_i32_53 = arith.constant 64 : i32
    %106 = vector.broadcast %c64_i32_53 : i32 to vector<16x128xi32>
    %107 = arith.xori %60, %106 : vector<16x128xi32>
    %108 = arith.cmpi eq, %105, %107 : vector<16x128xi32>
    %109 = arith.select %108, %103, %104 : vector<16x128xi1>, vector<16x128xf32>
    %c0_54 = arith.constant 0 : index
    %c0_55 = arith.constant 0 : index
    %c0_56 = arith.constant 0 : index
    %c0_57 = arith.constant 0 : index
    %110 = vector.load %arg7[%c0_54, %c0_55, %c0_56, %c0_57] : memref<1x1x16x128xf32, #tpu.memory_space<vmem>>, vector<1x1x16x128xf32>
    %111 = vector.shape_cast %110 : vector<1x1x16x128xf32> to vector<16x128xf32>
    %112 = tpu.iota {dimensions = array<i32: 1>} : vector<16x128xi32>
    %c1_i32_58 = arith.constant 1 : i32
    %113 = tpu.dynamic_rotate %111 by %c1_i32_58 dim 1 : vector<16x128xf32>, i32 -> vector<16x128xf32>
    %c127_i32_59 = arith.constant 127 : i32
    %114 = tpu.dynamic_rotate %111 by %c127_i32_59 dim 1 : vector<16x128xf32>, i32 -> vector<16x128xf32>
    %c1_i32_60 = arith.constant 1 : i32
    %115 = tpu.dynamic_rotate %112 by %c1_i32_60 dim 1 : vector<16x128xi32>, i32 -> vector<16x128xi32>
    %c1_i32_61 = arith.constant 1 : i32
    %116 = vector.broadcast %c1_i32_61 : i32 to vector<16x128xi32>
    %117 = arith.xori %112, %116 : vector<16x128xi32>
    %118 = arith.cmpi eq, %115, %117 : vector<16x128xi32>
    %119 = arith.select %118, %113, %114 : vector<16x128xi1>, vector<16x128xf32>
    %c2_i32_62 = arith.constant 2 : i32
    %120 = tpu.dynamic_rotate %119 by %c2_i32_62 dim 1 : vector<16x128xf32>, i32 -> vector<16x128xf32>
    %c126_i32_63 = arith.constant 126 : i32
    %121 = tpu.dynamic_rotate %119 by %c126_i32_63 dim 1 : vector<16x128xf32>, i32 -> vector<16x128xf32>
    %c2_i32_64 = arith.constant 2 : i32
    %122 = tpu.dynamic_rotate %112 by %c2_i32_64 dim 1 : vector<16x128xi32>, i32 -> vector<16x128xi32>
    %c2_i32_65 = arith.constant 2 : i32
    %123 = vector.broadcast %c2_i32_65 : i32 to vector<16x128xi32>
    %124 = arith.xori %112, %123 : vector<16x128xi32>
    %125 = arith.cmpi eq, %122, %124 : vector<16x128xi32>
    %126 = arith.select %125, %120, %121 : vector<16x128xi1>, vector<16x128xf32>
    %c4_i32_66 = arith.constant 4 : i32
    %127 = tpu.dynamic_rotate %126 by %c4_i32_66 dim 1 : vector<16x128xf32>, i32 -> vector<16x128xf32>
    %c124_i32_67 = arith.constant 124 : i32
    %128 = tpu.dynamic_rotate %126 by %c124_i32_67 dim 1 : vector<16x128xf32>, i32 -> vector<16x128xf32>
    %c4_i32_68 = arith.constant 4 : i32
    %129 = tpu.dynamic_rotate %112 by %c4_i32_68 dim 1 : vector<16x128xi32>, i32 -> vector<16x128xi32>
    %c4_i32_69 = arith.constant 4 : i32
    %130 = vector.broadcast %c4_i32_69 : i32 to vector<16x128xi32>
    %131 = arith.xori %112, %130 : vector<16x128xi32>
    %132 = arith.cmpi eq, %129, %131 : vector<16x128xi32>
    %133 = arith.select %132, %127, %128 : vector<16x128xi1>, vector<16x128xf32>
    %c8_i32_70 = arith.constant 8 : i32
    %134 = tpu.dynamic_rotate %133 by %c8_i32_70 dim 1 : vector<16x128xf32>, i32 -> vector<16x128xf32>
    %c120_i32_71 = arith.constant 120 : i32
    %135 = tpu.dynamic_rotate %133 by %c120_i32_71 dim 1 : vector<16x128xf32>, i32 -> vector<16x128xf32>
    %c8_i32_72 = arith.constant 8 : i32
    %136 = tpu.dynamic_rotate %112 by %c8_i32_72 dim 1 : vector<16x128xi32>, i32 -> vector<16x128xi32>
    %c8_i32_73 = arith.constant 8 : i32
    %137 = vector.broadcast %c8_i32_73 : i32 to vector<16x128xi32>
    %138 = arith.xori %112, %137 : vector<16x128xi32>
    %139 = arith.cmpi eq, %136, %138 : vector<16x128xi32>
    %140 = arith.select %139, %134, %135 : vector<16x128xi1>, vector<16x128xf32>
    %c16_i32_74 = arith.constant 16 : i32
    %141 = tpu.dynamic_rotate %140 by %c16_i32_74 dim 1 : vector<16x128xf32>, i32 -> vector<16x128xf32>
    %c112_i32_75 = arith.constant 112 : i32
    %142 = tpu.dynamic_rotate %140 by %c112_i32_75 dim 1 : vector<16x128xf32>, i32 -> vector<16x128xf32>
    %c16_i32_76 = arith.constant 16 : i32
    %143 = tpu.dynamic_rotate %112 by %c16_i32_76 dim 1 : vector<16x128xi32>, i32 -> vector<16x128xi32>
    %c16_i32_77 = arith.constant 16 : i32
    %144 = vector.broadcast %c16_i32_77 : i32 to vector<16x128xi32>
    %145 = arith.xori %112, %144 : vector<16x128xi32>
    %146 = arith.cmpi eq, %143, %145 : vector<16x128xi32>
    %147 = arith.select %146, %141, %142 : vector<16x128xi1>, vector<16x128xf32>
    %c32_i32_78 = arith.constant 32 : i32
    %148 = tpu.dynamic_rotate %147 by %c32_i32_78 dim 1 : vector<16x128xf32>, i32 -> vector<16x128xf32>
    %c96_i32_79 = arith.constant 96 : i32
    %149 = tpu.dynamic_rotate %147 by %c96_i32_79 dim 1 : vector<16x128xf32>, i32 -> vector<16x128xf32>
    %c32_i32_80 = arith.constant 32 : i32
    %150 = tpu.dynamic_rotate %112 by %c32_i32_80 dim 1 : vector<16x128xi32>, i32 -> vector<16x128xi32>
    %c32_i32_81 = arith.constant 32 : i32
    %151 = vector.broadcast %c32_i32_81 : i32 to vector<16x128xi32>
    %152 = arith.xori %112, %151 : vector<16x128xi32>
    %153 = arith.cmpi eq, %150, %152 : vector<16x128xi32>
    %154 = arith.select %153, %148, %149 : vector<16x128xi1>, vector<16x128xf32>
    %c64_i32_82 = arith.constant 64 : i32
    %155 = tpu.dynamic_rotate %154 by %c64_i32_82 dim 1 : vector<16x128xf32>, i32 -> vector<16x128xf32>
    %c64_i32_83 = arith.constant 64 : i32
    %156 = tpu.dynamic_rotate %154 by %c64_i32_83 dim 1 : vector<16x128xf32>, i32 -> vector<16x128xf32>
    %c64_i32_84 = arith.constant 64 : i32
    %157 = tpu.dynamic_rotate %112 by %c64_i32_84 dim 1 : vector<16x128xi32>, i32 -> vector<16x128xi32>
    %c64_i32_85 = arith.constant 64 : i32
    %158 = vector.broadcast %c64_i32_85 : i32 to vector<16x128xi32>
    %159 = arith.xori %112, %158 : vector<16x128xi32>
    %160 = arith.cmpi eq, %157, %159 : vector<16x128xi32>
    %161 = arith.select %160, %155, %156 : vector<16x128xi1>, vector<16x128xf32>
    %162 = arith.extui %2 : i1 to i32
    %c0_i32_86 = arith.constant 0 : i32
    %163 = arith.cmpi ne, %162, %c0_i32_86 : i32
    scf.if %163 {
      %167 = vector.extract_strided_slice %161 {offsets = [0, 0], sizes = [8, 128], strides = [1, 1]} : vector<16x128xf32> to vector<8x128xf32>
      %cst = arith.constant 0.000000e+00 : f32
      %168 = vector.broadcast %cst : f32 to vector<8x128xf32>
      %169 = arith.subf %168, %167 : vector<8x128xf32>
      %c0_88 = arith.constant 0 : index
      %c0_89 = arith.constant 0 : index
      %c0_90 = arith.constant 0 : index
      %c0_91 = arith.constant 0 : index
      %170 = vector.load %arg9[%c0_88, %c0_89, %c0_90, %c0_91] : memref<1x1x16x128xf32, #tpu.memory_space<vmem>>, vector<1x1x8x128xf32>
      %171 = vector.shape_cast %170 : vector<1x1x8x128xf32> to vector<8x128xf32>
      %172 = vector.shape_cast %169 : vector<8x128xf32> to vector<1x1x8x128xf32>
      tpu.vector_store %arg9[%c0_88, %c0_89, %c0_90, %c0_91], %172 {strides = array<i32>} : memref<1x1x16x128xf32, #tpu.memory_space<vmem>>, vector<1x1x8x128xf32>,
      %173 = vector.extract_strided_slice %109 {offsets = [0, 0], sizes = [8, 128], strides = [1, 1]} : vector<16x128xf32> to vector<8x128xf32>
      %cst_92 = arith.constant 0.000000e+00 : f32
      %174 = vector.broadcast %cst_92 : f32 to vector<8x128xf32>
      %175 = arith.subf %174, %173 : vector<8x128xf32>
      %c0_93 = arith.constant 0 : index
      %c0_94 = arith.constant 0 : index
      %c0_95 = arith.constant 0 : index
      %c0_96 = arith.constant 0 : index
      %176 = vector.load %arg10[%c0_93, %c0_94, %c0_95, %c0_96] : memref<1x1x16x128xf32, #tpu.memory_space<vmem>>, vector<1x1x8x128xf32>
      %177 = vector.shape_cast %176 : vector<1x1x8x128xf32> to vector<8x128xf32>
      %178 = vector.shape_cast %175 : vector<8x128xf32> to vector<1x1x8x128xf32>
      tpu.vector_store %arg10[%c0_93, %c0_94, %c0_95, %c0_96], %178 {strides = array<i32>} : memref<1x1x16x128xf32, #tpu.memory_space<vmem>>, vector<1x1x8x128xf32>,
      %179 = vector.extract_strided_slice %161 {offsets = [8, 0], sizes = [8, 128], strides = [1, 1]} : vector<16x128xf32> to vector<8x128xf32>
      %c0_97 = arith.constant 0 : index
      %c0_98 = arith.constant 0 : index
      %c8 = arith.constant 8 : index
      %c0_99 = arith.constant 0 : index
      %180 = vector.load %arg9[%c0_97, %c0_98, %c8, %c0_99] : memref<1x1x16x128xf32, #tpu.memory_space<vmem>>, vector<1x1x8x128xf32>
      %181 = vector.shape_cast %180 : vector<1x1x8x128xf32> to vector<8x128xf32>
      %182 = vector.shape_cast %179 : vector<8x128xf32> to vector<1x1x8x128xf32>
      tpu.vector_store %arg9[%c0_97, %c0_98, %c8, %c0_99], %182 {strides = array<i32>} : memref<1x1x16x128xf32, #tpu.memory_space<vmem>>, vector<1x1x8x128xf32>,
      %183 = vector.extract_strided_slice %109 {offsets = [8, 0], sizes = [8, 128], strides = [1, 1]} : vector<16x128xf32> to vector<8x128xf32>
      %c0_100 = arith.constant 0 : index
      %c0_101 = arith.constant 0 : index
      %c8_102 = arith.constant 8 : index
      %c0_103 = arith.constant 0 : index
      %184 = vector.load %arg10[%c0_100, %c0_101, %c8_102, %c0_103] : memref<1x1x16x128xf32, #tpu.memory_space<vmem>>, vector<1x1x8x128xf32>
      %185 = vector.shape_cast %184 : vector<1x1x8x128xf32> to vector<8x128xf32>
      %186 = vector.shape_cast %183 : vector<8x128xf32> to vector<1x1x8x128xf32>
      tpu.vector_store %arg10[%c0_100, %c0_101, %c8_102, %c0_103], %186 {strides = array<i32>} : memref<1x1x16x128xf32, #tpu.memory_space<vmem>>, vector<1x1x8x128xf32>,
    } else {
    }
    %true = arith.constant true
    %164 = arith.xori %2, %true : i1
    %165 = arith.extui %164 : i1 to i32
    %c0_i32_87 = arith.constant 0 : i32
    %166 = arith.cmpi ne, %165, %c0_i32_87 : i32
    scf.if %166 {
      %167 = vector.extract_strided_slice %109 {offsets = [0, 0], sizes = [8, 128], strides = [1, 1]} : vector<16x128xf32> to vector<8x128xf32>
      %cst = arith.constant 0.000000e+00 : f32
      %168 = vector.broadcast %cst : f32 to vector<8x128xf32>
      %169 = arith.subf %168, %167 : vector<8x128xf32>
      %c0_88 = arith.constant 0 : index
      %c0_89 = arith.constant 0 : index
      %c0_90 = arith.constant 0 : index
      %c0_91 = arith.constant 0 : index
      %170 = vector.load %arg9[%c0_88, %c0_89, %c0_90, %c0_91] : memref<1x1x16x128xf32, #tpu.memory_space<vmem>>, vector<1x1x8x128xf32>
      %171 = vector.shape_cast %170 : vector<1x1x8x128xf32> to vector<8x128xf32>
      %172 = vector.shape_cast %169 : vector<8x128xf32> to vector<1x1x8x128xf32>
      tpu.vector_store %arg9[%c0_88, %c0_89, %c0_90, %c0_91], %172 {strides = array<i32>} : memref<1x1x16x128xf32, #tpu.memory_space<vmem>>, vector<1x1x8x128xf32>,
      %173 = vector.extract_strided_slice %161 {offsets = [0, 0], sizes = [8, 128], strides = [1, 1]} : vector<16x128xf32> to vector<8x128xf32>
      %cst_92 = arith.constant 0.000000e+00 : f32
      %174 = vector.broadcast %cst_92 : f32 to vector<8x128xf32>
      %175 = arith.subf %174, %173 : vector<8x128xf32>
      %c0_93 = arith.constant 0 : index
      %c0_94 = arith.constant 0 : index
      %c0_95 = arith.constant 0 : index
      %c0_96 = arith.constant 0 : index
      %176 = vector.load %arg10[%c0_93, %c0_94, %c0_95, %c0_96] : memref<1x1x16x128xf32, #tpu.memory_space<vmem>>, vector<1x1x8x128xf32>
      %177 = vector.shape_cast %176 : vector<1x1x8x128xf32> to vector<8x128xf32>
      %178 = vector.shape_cast %175 : vector<8x128xf32> to vector<1x1x8x128xf32>
      tpu.vector_store %arg10[%c0_93, %c0_94, %c0_95, %c0_96], %178 {strides = array<i32>} : memref<1x1x16x128xf32, #tpu.memory_space<vmem>>, vector<1x1x8x128xf32>,
      %179 = vector.extract_strided_slice %109 {offsets = [8, 0], sizes = [8, 128], strides = [1, 1]} : vector<16x128xf32> to vector<8x128xf32>
      %c0_97 = arith.constant 0 : index
      %c0_98 = arith.constant 0 : index
      %c8 = arith.constant 8 : index
      %c0_99 = arith.constant 0 : index
      %180 = vector.load %arg9[%c0_97, %c0_98, %c8, %c0_99] : memref<1x1x16x128xf32, #tpu.memory_space<vmem>>, vector<1x1x8x128xf32>
      %181 = vector.shape_cast %180 : vector<1x1x8x128xf32> to vector<8x128xf32>
      %182 = vector.shape_cast %179 : vector<8x128xf32> to vector<1x1x8x128xf32>
      tpu.vector_store %arg9[%c0_97, %c0_98, %c8, %c0_99], %182 {strides = array<i32>} : memref<1x1x16x128xf32, #tpu.memory_space<vmem>>, vector<1x1x8x128xf32>,
      %183 = vector.extract_strided_slice %161 {offsets = [8, 0], sizes = [8, 128], strides = [1, 1]} : vector<16x128xf32> to vector<8x128xf32>
      %c0_100 = arith.constant 0 : index
      %c0_101 = arith.constant 0 : index
      %c8_102 = arith.constant 8 : index
      %c0_103 = arith.constant 0 : index
      %184 = vector.load %arg10[%c0_100, %c0_101, %c8_102, %c0_103] : memref<1x1x16x128xf32, #tpu.memory_space<vmem>>, vector<1x1x8x128xf32>
      %185 = vector.shape_cast %184 : vector<1x1x8x128xf32> to vector<8x128xf32>
      %186 = vector.shape_cast %183 : vector<8x128xf32> to vector<1x1x8x128xf32>
      tpu.vector_store %arg10[%c0_100, %c0_101, %c8_102, %c0_103], %186 {strides = array<i32>} : memref<1x1x16x128xf32, #tpu.memory_space<vmem>>, vector<1x1x8x128xf32>,
    } else {
    }
    return
  }
  func.func @transform_0(%arg0: i32, %arg1: i32, %arg2: i32, %arg3: memref<5xi32, #tpu.memory_space<smem>>, %arg4: memref<5xi32, #tpu.memory_space<smem>>) -> (i32, i32, i32, i32) {
    %0 = arith.index_cast %arg1 : i32 to index
    %1 = memref.load %arg3[%0] : memref<5xi32, #tpu.memory_space<smem>>
    %c0_i32 = arith.constant 0 : i32
    %2 = arith.subi %c0_i32, %arg2 : i32
    %c0_i32_0 = arith.constant 0 : i32
    %c0_i32_1 = arith.constant 0 : i32
    return %arg0, %1, %c0_i32_0, %2 : i32, i32, i32, i32
  }
  func.func @transform_1(%arg0: i32, %arg1: i32, %arg2: i32, %arg3: memref<5xi32, #tpu.memory_space<smem>>, %arg4: memref<5xi32, #tpu.memory_space<smem>>) -> (i32, i32, i32, i32) {
    %0 = arith.index_cast %arg1 : i32 to index
    %1 = memref.load %arg3[%0] : memref<5xi32, #tpu.memory_space<smem>>
    %c0_i32 = arith.constant 0 : i32
    %2 = arith.subi %c0_i32, %arg2 : i32
    %c0_i32_0 = arith.constant 0 : i32
    %c0_i32_1 = arith.constant 0 : i32
    return %arg0, %1, %c0_i32_0, %2 : i32, i32, i32, i32
  }
  func.func @transform_2(%arg0: i32, %arg1: i32, %arg2: i32, %arg3: memref<5xi32, #tpu.memory_space<smem>>, %arg4: memref<5xi32, #tpu.memory_space<smem>>) -> (i32, i32, i32, i32) {
    %0 = arith.index_cast %arg1 : i32 to index
    %1 = memref.load %arg3[%0] : memref<5xi32, #tpu.memory_space<smem>>
    %c0_i32 = arith.constant 0 : i32
    %2 = arith.subi %c0_i32, %arg2 : i32
    %c0_i32_0 = arith.constant 0 : i32
    %c0_i32_1 = arith.constant 0 : i32
    return %arg0, %1, %c0_i32_0, %2 : i32, i32, i32, i32
  }
  func.func @transform_3(%arg0: i32, %arg1: i32, %arg2: i32, %arg3: memref<5xi32, #tpu.memory_space<smem>>, %arg4: memref<5xi32, #tpu.memory_space<smem>>) -> (i32, i32, i32, i32) {
    %c0_i32 = arith.constant 0 : i32
    %c0_i32_0 = arith.constant 0 : i32
    return %arg0, %arg1, %c0_i32, %arg2 : i32, i32, i32, i32
  }
  func.func @transform_4(%arg0: i32, %arg1: i32, %arg2: i32, %arg3: memref<5xi32, #tpu.memory_space<smem>>, %arg4: memref<5xi32, #tpu.memory_space<smem>>) -> (i32, i32, i32, i32) {
    %c0_i32 = arith.constant 0 : i32
    %c0_i32_0 = arith.constant 0 : i32
    return %arg0, %arg1, %c0_i32, %arg2 : i32, i32, i32, i32
  }
  func.func @transform_5(%arg0: i32, %arg1: i32, %arg2: i32, %arg3: memref<5xi32, #tpu.memory_space<smem>>, %arg4: memref<5xi32, #tpu.memory_space<smem>>) -> (i32, i32, i32, i32) {
    %c0_i32 = arith.constant 0 : i32
    %c0_i32_0 = arith.constant 0 : i32
    return %arg0, %arg1, %c0_i32, %arg2 : i32, i32, i32, i32
  }
}

</mosaic_0001>

<llo_original>
// kernel: _paf_hflip_forward.1
$region0: #{_paf_hflip_forward.1}
  #allocation0 [shape = 'u32[]', space=smem, size = 0x4, offset = 0x4, fixed_abs, tag = 'smem constant byte address 0x4 - core index']
  #allocation1 [shape = 'u32[144,128]{1,0:T(1,128)}', space=vmem, size = 0x12000, scoped, tag = 'internal scratch']
  #allocation2 [shape = 's32[1]{0}', space=sflag, size = 0x4, scoped, tag = 'scoped memory for _paf_hflip_forward.1']
  #allocation3 [shape = 'u8[512]{0}', space=smem, size = 0x200, scoped, tag = 'prefetched SMEM operand 0']
  #allocation4 [shape = 'u8[512]{0}', space=smem, size = 0x200, scoped, tag = 'prefetched SMEM operand 1']
  %s0 = inlined_call_operand.vmem [shape: s32[5], index: 0, kind: input, shape index: {}]
  %s1 = inlined_call_operand.vmem [shape: s32[5], index: 1, kind: input, shape index: {}]
  %s2 = inlined_call_operand.hbm [shape: f32[2,5,8,128], index: 2, kind: input, shape index: {}]
  %s3 = inlined_call_operand.hbm [shape: f32[2,5,16,128], index: 3, kind: input, shape index: {}]
  %s4 = inlined_call_operand.hbm [shape: f32[2,5,16,128], index: 4, kind: input, shape index: {}]
  %s5 = inlined_call_operand.hbm [shape: f32[2,5,8,128], index: 5, kind: output, shape index: {0}]
  %s6 = inlined_call_operand.hbm [shape: f32[2,5,16,128], index: 6, kind: output, shape index: {1}]
  %s7 = inlined_call_operand.hbm [shape: f32[2,5,16,128], index: 7, kind: output, shape index: {2}]
  %8 = xla_tuple %s5, %s6, %s7
  %s9 = sld [smem:[#allocation0]]
  $region81: #{_paf_hflip_forward.1} parent=0
    _
  %s11 = ssub.s32 1, %s9
  %s12 = scalar_select 0, %s11, %s9
  %s13 = sshll.u32 %s0, 4
  %s14 = int_to_ptr.vmem [resolvable:$true] %s13
  %16 = dma.vmem_to_smem %s14, 16, [#allocation3], [#allocation2]
  %s17 = sshll.u32 %s1, 4
  %s18 = int_to_ptr.vmem [resolvable:$true] %s17
  %20 = dma.vmem_to_smem %s18, 16, [#allocation4], [#allocation2]
  %21 = dma.done [#allocation2], 32
  %22 = sfence
  $region1: #{_paf_hflip_forward.1} parent=0
    #allocation5 [shape = 'u8[8192]{0}', space=vmem, size = 0x2000, scoped, tag = 'input window, operand 2']
    #allocation6 [shape = 's32[2]{0}', space=sflag, size = 0x8, scoped, tag = 'scoped memory for _paf_hflip_forward.1']
    #allocation7 [shape = 's32[2]{0}', space=sflag, size = 0x8, scoped, tag = 'scoped memory for _paf_hflip_forward.1']
    #allocation8 [shape = 'u8[16384]{0}', space=vmem, size = 0x4000, scoped, tag = 'input window, operand 3']
    #allocation9 [shape = 's32[2]{0}', space=sflag, size = 0x8, scoped, tag = 'scoped memory for _paf_hflip_forward.1']
    #allocation10 [shape = 'u8[16384]{0}', space=vmem, size = 0x4000, scoped, tag = 'input window, operand 4']
    #allocation11 [shape = 'u8[8192]{0}', space=vmem, size = 0x2000, scoped, tag = 'output window, operand 0']
    #allocation12 [shape = 'u8[16384]{0}', space=vmem, size = 0x4000, scoped, tag = 'output window, operand 1']
    #allocation13 [shape = 's32[2]{0}', space=sflag, size = 0x8, scoped, tag = 'scoped memory for _paf_hflip_forward.1']
    #allocation14 [shape = 'u8[16384]{0}', space=vmem, size = 0x4000, scoped, tag = 'output window, operand 2']
    %23 = vsyncpa [#allocation6], 0
    %s24 = scalar_lea.sflag [#allocation6], 1
    %25 = vsyncpa %s24, 0
    %26 = vsyncpa [#allocation9], 0
    %s27 = scalar_lea.sflag [#allocation9], 1
    %28 = vsyncpa %s27, 0
    %29 = vsyncpa [#allocation7], 0
    %s30 = scalar_lea.sflag [#allocation7], 1
    %31 = vsyncpa %s30, 0
    %32 = vsyncpa [#allocation13], 0
    %s33 = scalar_lea.sflag [#allocation13], 1
    %34 = vsyncpa %s33, 0
    loop: start=0, step=1, limit=12
    $region2: #{_paf_hflip_forward.1} parent=1 // loop_pre_header
      _
    $region3: #{_paf_hflip_forward.1} parent=1 // loop_header
      %s36 = sphi 0, %s40
      %p37 = scmp.ge.s32.totalorder %s36, 12
      %s43 = sphi 0, %s62
      %s44 = sphi 0, %s58
      %s45 = sphi 0, %s54
      %s46 = sphi 0, %s43
      %s47 = sphi 0, %s44
      %s48 = sphi 0, %s45
      %s49 = sphi 0, %s46
      %s50 = sphi 0, %s47
      %s51 = sphi 0, %s48
      %s73 = sphi 0, %s75
      %s76 = sphi 0, %s73
      %s77 = sphi 0, %s76
      %s93 = sphi 0, %s77
      %s107 = sphi 0, %s109
      %s110 = sphi 0, %s107
      %s111 = sphi 0, %s110
      %s127 = sphi 0, %s111
      %s141 = sphi 0, %s143
      %s144 = sphi 0, %s141
      %s145 = sphi 0, %s144
      %s161 = sphi 0, %s145
      %s171 = sphi 0, %s173
      %s174 = sphi 0, %s171
      %s175 = sphi 0, %s174
      %s191 = sphi 0, %s175
      %s201 = sphi 0, %s203
      %s204 = sphi 0, %s201
      %s205 = sphi 0, %s204
      %s221 = sphi 0, %s205
      %s231 = sphi 0, %s233
      %s234 = sphi 0, %s231
      %s235 = sphi 0, %s234
      %s251 = sphi 0, %s235
    $region4: #{_paf_hflip_forward.1} parent=1 // loop_header_branch
      %39 = sbr.rel (%p37) target = $region8
    $region5: #{_paf_hflip_forward.1} parent=1 // loop_body
      %s41 = ssub.s32 %s36, 1
      %s42 = ssub.s32 %s36, 2
      %s52 = sadd.s32 1, %s45
      %p53 = scmp.ge.s32.totalorder %s52, 1
      %s54 = scalar_select %p53, 0, %s52
      %s55 = sadd.s32 1, %s44
      %s56 = scalar_select %p53, %s55, %s44
      %p57 = scmp.ge.s32.totalorder %s56, 5
      %s58 = scalar_select %p57, 0, %s56
      %s59 = sadd.s32 1, %s43
      %s60 = scalar_select %p57, %s59, %s43
      %p61 = scmp.ge.s32.totalorder %s60, 2
      %s62 = scalar_select %p61, 0, %s60
      %s63 = sld [smem:[#allocation3 + %s44]]
      %s64 = ssub.s32 0, %s45
      %s65 = sld [smem:[#allocation3 + %s58]]
      %s66 = ssub.s32 0, %s54
      %s67 = ssub.s32 %s43, %s62
      %s68 = ssub.s32 %s63, %s65
      %s69 = sor.u32 %s67, %s68
      %s70 = ssub.s32 %s64, %s66
      %s71 = sor.u32 %s69, %s70
      %p72 = scmp.eq.s32.totalorder %s71, 0
      %s74 = sadd.s32 %s73, 1
      %s75 = scalar_select %p72, %s73, %s74
      %p78 = pneg %p72
      %p79 = scmp.eq.s32.totalorder %s36, 9
      %p80 = por %p78, %p79
      %p81 = scmp.ne.s32.totalorder %s73, %s76
      %p82 = scmp.eq.s32.totalorder %s36, 0
      %p83 = por %p81, %p82
      %p84 = scmp.ne.s32.totalorder %s73, %s76
      %p85 = scmp.eq.s32.totalorder %s41, 9
      %p86 = por %p84, %p85
      %p87 = scmp.ne.s32.totalorder %s76, %s77
      %p88 = scmp.eq.s32.totalorder %s41, 0
      %p89 = por %p87, %p88
      %p90 = scmp.ne.s32.totalorder %s76, %s77
      %p91 = scmp.eq.s32.totalorder %s42, 9
      %p92 = por %p90, %p91
      %p94 = scmp.ne.s32.totalorder %s77, %s93
      %p95 = scmp.eq.s32.totalorder %s42, 0
      %p96 = por %p94, %p95
      %s97 = sld [smem:[#allocation3 + %s44]]
      %s98 = ssub.s32 0, %s45
      %s99 = sld [smem:[#allocation3 + %s58]]
      %s100 = ssub.s32 0, %s54
      %s101 = ssub.s32 %s43, %s62
      %s102 = ssub.s32 %s97, %s99
      %s103 = sor.u32 %s101, %s102
      %s104 = ssub.s32 %s98, %s100
      %s105 = sor.u32 %s103, %s104
      %p106 = scmp.eq.s32.totalorder %s105, 0
      %s108 = sadd.s32 %s107, 1
      %s109 = scalar_select %p106, %s107, %s108
      %p112 = pneg %p106
      %p113 = scmp.eq.s32.totalorder %s36, 9
      %p114 = por %p112, %p113
      %p115 = scmp.ne.s32.totalorder %s107, %s110
      %p116 = scmp.eq.s32.totalorder %s36, 0
      %p117 = por %p115, %p116
      %p118 = scmp.ne.s32.totalorder %s107, %s110
      %p119 = scmp.eq.s32.totalorder %s41, 9
      %p120 = por %p118, %p119
      %p121 = scmp.ne.s32.totalorder %s110, %s111
      %p122 = scmp.eq.s32.totalorder %s41, 0
      %p123 = por %p121, %p122
      %p124 = scmp.ne.s32.totalorder %s110, %s111
      %p125 = scmp.eq.s32.totalorder %s42, 9
      %p126 = por %p124, %p125
      %p128 = scmp.ne.s32.totalorder %s111, %s127
      %p129 = scmp.eq.s32.totalorder %s42, 0
      %p130 = por %p128, %p129
      %s131 = sld [smem:[#allocation3 + %s44]]
      %s132 = ssub.s32 0, %s45
      %s133 = sld [smem:[#allocation3 + %s58]]
      %s134 = ssub.s32 0, %s54
      %s135 = ssub.s32 %s43, %s62
      %s136 = ssub.s32 %s131, %s133
      %s137 = sor.u32 %s135, %s136
      %s138 = ssub.s32 %s132, %s134
      %s139 = sor.u32 %s137, %s138
      %p140 = scmp.eq.s32.totalorder %s139, 0
      %s142 = sadd.s32 %s141, 1
      %s143 = scalar_select %p140, %s141, %s142
      %p146 = pneg %p140
      %p147 = scmp.eq.s32.totalorder %s36, 9
      %p148 = por %p146, %p147
      %p149 = scmp.ne.s32.totalorder %s141, %s144
      %p150 = scmp.eq.s32.totalorder %s36, 0
      %p151 = por %p149, %p150
      %p152 = scmp.ne.s32.totalorder %s141, %s144
      %p153 = scmp.eq.s32.totalorder %s41, 9
      %p154 = por %p152, %p153
      %p155 = scmp.ne.s32.totalorder %s144, %s145
      %p156 = scmp.eq.s32.totalorder %s41, 0
      %p157 = por %p155, %p156
      %p158 = scmp.ne.s32.totalorder %s144, %s145
      %p159 = scmp.eq.s32.totalorder %s42, 9
      %p160 = por %p158, %p159
      %p162 = scmp.ne.s32.totalorder %s145, %s161
      %p163 = scmp.eq.s32.totalorder %s42, 0
      %p164 = por %p162, %p163
      %s165 = ssub.s32 %s43, %s62
      %s166 = ssub.s32 %s44, %s58
      %s167 = sor.u32 %s165, %s166
      %s168 = ssub.s32 %s45, %s54
      %s169 = sor.u32 %s167, %s168
      %p170 = scmp.eq.s32.totalorder %s169, 0
      %s172 = sadd.s32 %s171, 1
      %s173 = scalar_select %p170, %s171, %s172
      %p176 = pneg %p170
      %p177 = scmp.eq.s32.totalorder %s36, 9
      %p178 = por %p176, %p177
      %p179 = scmp.ne.s32.totalorder %s171, %s174
      %p180 = scmp.eq.s32.totalorder %s36, 0
      %p181 = por %p179, %p180
      %p182 = scmp.ne.s32.totalorder %s171, %s174
      %p183 = scmp.eq.s32.totalorder %s41, 9
      %p184 = por %p182, %p183
      %p185 = scmp.ne.s32.totalorder %s174, %s175
      %p186 = scmp.eq.s32.totalorder %s41, 0
      %p187 = por %p185, %p186
      %p188 = scmp.ne.s32.totalorder %s174, %s175
      %p189 = scmp.eq.s32.totalorder %s42, 9
      %p190 = por %p188, %p189
      %p192 = scmp.ne.s32.totalorder %s175, %s191
      %p193 = scmp.eq.s32.totalorder %s42, 0
      %p194 = por %p192, %p193
      %s195 = ssub.s32 %s43, %s62
      %s196 = ssub.s32 %s44, %s58
      %s197 = sor.u32 %s195, %s196
      %s198 = ssub.s32 %s45, %s54
      %s199 = sor.u32 %s197, %s198
      %p200 = scmp.eq.s32.totalorder %s199, 0
      %s202 = sadd.s32 %s201, 1
      %s203 = scalar_select %p200, %s201, %s202
      %p206 = pneg %p200
      %p207 = scmp.eq.s32.totalorder %s36, 9
      %p208 = por %p206, %p207
      %p209 = scmp.ne.s32.totalorder %s201, %s204
      %p210 = scmp.eq.s32.totalorder %s36, 0
      %p211 = por %p209, %p210
      %p212 = scmp.ne.s32.totalorder %s201, %s204
      %p213 = scmp.eq.s32.totalorder %s41, 9
      %p214 = por %p212, %p213
      %p215 = scmp.ne.s32.totalorder %s204, %s205
      %p216 = scmp.eq.s32.totalorder %s41, 0
      %p217 = por %p215, %p216
      %p218 = scmp.ne.s32.totalorder %s204, %s205
      %p219 = scmp.eq.s32.totalorder %s42, 9
      %p220 = por %p218, %p219
      %p222 = scmp.ne.s32.totalorder %s205, %s221
      %p223 = scmp.eq.s32.totalorder %s42, 0
      %p224 = por %p222, %p223
      %s225 = ssub.s32 %s43, %s62
      %s226 = ssub.s32 %s44, %s58
      %s227 = sor.u32 %s225, %s226
      %s228 = ssub.s32 %s45, %s54
      %s229 = sor.u32 %s227, %s228
      %p230 = scmp.eq.s32.totalorder %s229, 0
      %s232 = sadd.s32 %s231, 1
      %s233 = scalar_select %p230, %s231, %s232
      %p236 = pneg %p230
      %p237 = scmp.eq.s32.totalorder %s36, 9
      %p238 = por %p236, %p237
      %p239 = scmp.ne.s32.totalorder %s231, %s234
      %p240 = scmp.eq.s32.totalorder %s36, 0
      %p241 = por %p239, %p240
      %p242 = scmp.ne.s32.totalorder %s231, %s234
      %p243 = scmp.eq.s32.totalorder %s41, 9
      %p244 = por %p242, %p243
      %p245 = scmp.ne.s32.totalorder %s234, %s235
      %p246 = scmp.eq.s32.totalorder %s41, 0
      %p247 = por %p245, %p246
      %p248 = scmp.ne.s32.totalorder %s234, %s235
      %p249 = scmp.eq.s32.totalorder %s42, 9
      %p250 = por %p248, %p249
      %p252 = scmp.ne.s32.totalorder %s235, %s251
      %p253 = scmp.eq.s32.totalorder %s42, 0
      %p254 = por %p252, %p253
      %p255 = scmp.le.s32.totalorder 1, %s36
      %p256 = scmp.lt.s32.totalorder %s36, 11
      %p257 = pnand %p255, %p256
      %p258 = pneg %p257
      // Predicated region
      $region9: #{_paf_hflip_forward.1} parent=5 // pred_check
        _
      $region10: #{_paf_hflip_forward.1} parent=5 // pred_check_branch
        %260 = sbr.rel (%p257) target = $region12
      $region11: #{_paf_hflip_forward.1} parent=5 // pred_region
        %s261 = ssub.s32 %s36, 1
      $region12: #{_paf_hflip_forward.1} parent=5 // pred_fallthru
        _
      %p262 = scmp.lt.s32.totalorder %s36, 10
      // Predicated region
      $region13: #{_paf_hflip_forward.1} parent=5 // pred_check
        %p263 = pneg %p262
      $region14: #{_paf_hflip_forward.1} parent=5 // pred_check_branch
        %265 = sbr.rel (%p263) target = $region16
      $region15: #{_paf_hflip_forward.1} parent=5 // pred_region
        // Predicated region
        $region17: #{_paf_hflip_forward.1} parent=15 // pred_check
          %p266 = pneg %p83
        $region18: #{_paf_hflip_forward.1} parent=15 // pred_check_branch
          %268 = sbr.rel (%p266) target = $region20
        $region19: #{_paf_hflip_forward.1} parent=15 // pred_region
          %s269 = sand.u32 %s73, 1
          %s270 = scalar_lea.sflag [#allocation6], %s269
          %s271 = sand.u32 %s73, 1
          %s272 = smul.addr %s271, 8
          %s273 = scalar_lea.vmem [#allocation5], %s272
          %s274 = sld [smem:[#allocation3 + %s44]]
          %s275 = ssub.s32 0, %s45
          %s277 = ssub.s32 128, 128
          %278 = vsyncadd %s270, %s277
          %s279 = sadd.s32 %s275, %s274
          %s280 = smul.addr %s43, 5
          %s281 = sadd.s32 %s279, %s280
          %s282 = smul.addr %s281, 128
          %s283 = scalar_lea.hbm %s2, %s282
          %s285 = sshll.u32 %s273, 4
          %s286 = int_to_ptr.vmem [resolvable:$true] %s285
          %288 = dma.hbm_to_vmem [thread:$0]  %s283, 128, %s286, %s270
        $region20: #{_paf_hflip_forward.1} parent=15 // pred_fallthru
          _
        // Predicated region
        $region21: #{_paf_hflip_forward.1} parent=15 // pred_check
          %p289 = pneg %p117
        $region22: #{_paf_hflip_forward.1} parent=15 // pred_check_branch
          %291 = sbr.rel (%p289) target = $region24
        $region23: #{_paf_hflip_forward.1} parent=15 // pred_region
          %s292 = sand.u32 %s36, 1
          %s293 = scalar_lea.sflag [#allocation9], %s292
          %s294 = sand.u32 %s107, 1
          %s295 = smul.addr %s294, 16
          %s296 = scalar_lea.vmem [#allocation8], %s295
          %s297 = sld [smem:[#allocation3 + %s44]]
          %s298 = ssub.s32 0, %s45
          %s300 = ssub.s32 256, 256
          %301 = vsyncadd %s293, %s300
          %s302 = smul.addr %s297, 2
          %s303 = sadd.s32 %s298, %s302
          %s304 = smul.addr %s43, 10
          %s305 = sadd.s32 %s303, %s304
          %s306 = smul.addr %s305, 128
          %s307 = scalar_lea.hbm %s3, %s306
          %s308 = sshll.u32 %s296, 4
          %s309 = int_to_ptr.vmem [resolvable:$true] %s308
          %314 = dma.hbm_to_vmem [thread:$0]  %s307, 256, %s309, %s293, 128, 128, 8
        $region24: #{_paf_hflip_forward.1} parent=15 // pred_fallthru
          _
        // Predicated region
        $region25: #{_paf_hflip_forward.1} parent=15 // pred_check
          %p315 = pneg %p151
        $region26: #{_paf_hflip_forward.1} parent=15 // pred_check_branch
          %317 = sbr.rel (%p315) target = $region28
        $region27: #{_paf_hflip_forward.1} parent=15 // pred_region
          %s318 = sand.u32 %s36, 1
          %s319 = scalar_lea.sflag [#allocation9], %s318
          %s320 = sand.u32 %s141, 1
          %s321 = smul.addr %s320, 16
          %s322 = scalar_lea.vmem [#allocation10], %s321
          %s323 = sld [smem:[#allocation3 + %s44]]
          %s324 = ssub.s32 0, %s45
          %s326 = ssub.s32 256, 256
          %327 = vsyncadd %s319, %s326
          %s328 = smul.addr %s323, 2
          %s329 = sadd.s32 %s324, %s328
          %s330 = smul.addr %s43, 10
          %s331 = sadd.s32 %s329, %s330
          %s332 = smul.addr %s331, 128
          %s333 = scalar_lea.hbm %s4, %s332
          %s334 = sshll.u32 %s322, 4
          %s335 = int_to_ptr.vmem [resolvable:$true] %s334
          %340 = dma.hbm_to_vmem [thread:$0]  %s333, 256, %s335, %s319, 128, 128, 8
        $region28: #{_paf_hflip_forward.1} parent=15 // pred_fallthru
          _
      $region16: #{_paf_hflip_forward.1} parent=5 // pred_fallthru
        _
      %p341 = scmp.le.s32.totalorder 1, %s36
      %p342 = scmp.lt.s32.totalorder %s36, 11
      %p343 = pnand %p341, %p342
      %p344 = pneg %p343
      // Predicated region
      $region29: #{_paf_hflip_forward.1} parent=5 // pred_check
        _
      $region30: #{_paf_hflip_forward.1} parent=5 // pred_check_branch
        %346 = sbr.rel (%p343) target = $region32
      $region31: #{_paf_hflip_forward.1} parent=5 // pred_region
        %s347 = ssub.s32 %s36, 1
        %s348 = sand.u32 %s76, 1
        %s349 = scalar_lea.sflag [#allocation6], %s348
        %s350 = sand.u32 %s76, 1
        %s351 = smul.addr %s350, 8
        %s352 = scalar_lea.vmem [#allocation5], %s351
        // Predicated region
        $region33: #{_paf_hflip_forward.1} parent=31 // pred_check
          %p353 = pneg %p89
        $region34: #{_paf_hflip_forward.1} parent=31 // pred_check_branch
          %355 = sbr.rel (%p353) target = $region36
        $region35: #{_paf_hflip_forward.1} parent=31 // pred_region
          %356 = dma.done %s349, 128
        $region36: #{_paf_hflip_forward.1} parent=31 // pred_fallthru
          _
        %s357 = sand.u32 %s41, 1
        %s358 = scalar_lea.sflag [#allocation9], %s357
        %s359 = sand.u32 %s110, 1
        %s360 = smul.addr %s359, 16
        %s361 = scalar_lea.vmem [#allocation8], %s360
        // Predicated region
        $region37: #{_paf_hflip_forward.1} parent=31 // pred_check
          %p362 = pneg %p123
        $region38: #{_paf_hflip_forward.1} parent=31 // pred_check_branch
          %364 = sbr.rel (%p362) target = $region40
        $region39: #{_paf_hflip_forward.1} parent=31 // pred_region
          %365 = dma.done %s358, 256
        $region40: #{_paf_hflip_forward.1} parent=31 // pred_fallthru
          _
        %s366 = sand.u32 %s41, 1
        %s367 = scalar_lea.sflag [#allocation9], %s366
        %s368 = sand.u32 %s144, 1
        %s369 = smul.addr %s368, 16
        %s370 = scalar_lea.vmem [#allocation10], %s369
        // Predicated region
        $region41: #{_paf_hflip_forward.1} parent=31 // pred_check
          %p371 = pneg %p157
        $region42: #{_paf_hflip_forward.1} parent=31 // pred_check_branch
          %373 = sbr.rel (%p371) target = $region44
        $region43: #{_paf_hflip_forward.1} parent=31 // pred_region
          %374 = dma.done %s367, 256
        $region44: #{_paf_hflip_forward.1} parent=31 // pred_fallthru
          _
        %s375 = sand.u32 %s76, 1
        %s376 = scalar_lea.sflag [#allocation6], %s375
        %s377 = sand.u32 %s76, 1
        %s378 = smul.addr %s377, 8
        %s379 = scalar_lea.vmem [#allocation5], %s378
        %p380 = pneg %p89
        %p381 = pneg %p86
        %s382 = sand.u32 %s41, 1
        %s383 = scalar_lea.sflag [#allocation9], %s382
        %s384 = sand.u32 %s110, 1
        %s385 = smul.addr %s384, 16
        %s386 = scalar_lea.vmem [#allocation8], %s385
        %p387 = pneg %p123
        %p388 = pneg %p120
        %s389 = sand.u32 %s41, 1
        %s390 = scalar_lea.sflag [#allocation9], %s389
        %s391 = sand.u32 %s144, 1
        %s392 = smul.addr %s391, 16
        %s393 = scalar_lea.vmem [#allocation10], %s392
        %p394 = pneg %p157
        %p395 = pneg %p154
        %p396 = pneg %p187
        %p397 = pneg %p184
        %s398 = sand.u32 %s174, 1
        %s399 = scalar_lea.sflag [#allocation7], %s398
        %s400 = sand.u32 %s174, 1
        %s401 = smul.addr %s400, 8
        %s402 = scalar_lea.vmem [#allocation11], %s401
        %p403 = pneg %p217
        %p404 = pneg %p214
        %s405 = sand.u32 %s41, 1
        %s406 = scalar_lea.sflag [#allocation13], %s405
        %s407 = sand.u32 %s204, 1
        %s408 = smul.addr %s407, 16
        %s409 = scalar_lea.vmem [#allocation12], %s408
        %p410 = pneg %p247
        %p411 = pneg %p244
        %s412 = sand.u32 %s41, 1
        %s413 = scalar_lea.sflag [#allocation13], %s412
        %s414 = sand.u32 %s234, 1
        %s415 = smul.addr %s414, 16
        %s416 = scalar_lea.vmem [#allocation14], %s415
        %s417 = sld [smem:[#allocation3 + %s47]]
        %s418 = ssub.s32 0, %s48
        %s419 = sld [smem:[#allocation3 + %s47]]
        %s420 = ssub.s32 0, %s48
        %s421 = sld [smem:[#allocation3 + %s47]]
        %s422 = ssub.s32 0, %s48
        %s423 = sld [smem:[#allocation4 + %s47]]
        %p424 = scmp.ne.s32.totalorder %s423, 0
        %v425 = vld [vmem:[%s352] sm:$0xff]
        %v426 = vlaneseq
        %v427 = vand.u32 %v426, 127
        %428 = vrot.lane.b32.xlu0 %v425, 1
        %v429 = vpop.permute.xlu0 %428
        %430 = vrot.lane.b32.xlu0 %v425, 127
        %v431 = vpop.permute.xlu0 %430
        %432 = vrot.lane.b32.xlu0 %v427, 1
        %v433 = vpop.permute.xlu0 %432
        %v434 = vxor.u32 %v427, 1
        %vm435 = vcmp.eq.s32.totalorder %v433, %v434
        %v436 = vsel %vm435, %v429, %v431
        %437 = vrot.lane.b32.xlu0 %v436, 2
        %v438 = vpop.permute.xlu0 %437
        %439 = vrot.lane.b32.xlu0 %v436, 126
        %v440 = vpop.permute.xlu0 %439
        %441 = vrot.lane.b32.xlu0 %v427, 2
        %v442 = vpop.permute.xlu0 %441
        %v443 = vxor.u32 %v427, 2
        %vm444 = vcmp.eq.s32.totalorder %v442, %v443
        %v445 = vsel %vm444, %v438, %v440
        %446 = vrot.lane.b32.xlu0 %v445, 4
        %v447 = vpop.permute.xlu0 %446
        %448 = vrot.lane.b32.xlu0 %v445, 124
        %v449 = vpop.permute.xlu0 %448
        %450 = vrot.lane.b32.xlu0 %v427, 4
        %v451 = vpop.permute.xlu0 %450
        %v452 = vxor.u32 %v427, 4
        %vm453 = vcmp.eq.s32.totalorder %v451, %v452
        %v454 = vsel %vm453, %v447, %v449
        %455 = vrot.lane.b32.xlu0 %v454, 8
        %v456 = vpop.permute.xlu0 %455
        %457 = vrot.lane.b32.xlu0 %v454, 120
        %v458 = vpop.permute.xlu0 %457
        %459 = vrot.lane.b32.xlu0 %v427, 8
        %v460 = vpop.permute.xlu0 %459
        %v461 = vxor.u32 %v427, 8
        %vm462 = vcmp.eq.s32.totalorder %v460, %v461
        %v463 = vsel %vm462, %v456, %v458
        %464 = vrot.lane.b32.xlu0 %v463, 16
        %v465 = vpop.permute.xlu0 %464
        %466 = vrot.lane.b32.xlu0 %v463, 112
        %v467 = vpop.permute.xlu0 %466
        %468 = vrot.lane.b32.xlu0 %v427, 16
        %v469 = vpop.permute.xlu0 %468
        %v470 = vxor.u32 %v427, 16
        %vm471 = vcmp.eq.s32.totalorder %v469, %v470
        %v472 = vsel %vm471, %v465, %v467
        %473 = vrot.lane.b32.xlu0 %v472, 32
        %v474 = vpop.permute.xlu0 %473
        %475 = vrot.lane.b32.xlu0 %v472, 96
        %v476 = vpop.permute.xlu0 %475
        %477 = vrot.lane.b32.xlu0 %v427, 32
        %v478 = vpop.permute.xlu0 %477
        %v479 = vxor.u32 %v427, 32
        %vm480 = vcmp.eq.s32.totalorder %v478, %v479
        %v481 = vsel %vm480, %v474, %v476
        %482 = vrot.lane.b32.xlu0 %v481, 64
        %v483 = vpop.permute.xlu0 %482
        %484 = vst [vmem:[%s402] sm:$0xff] %v483
        %v485 = vld [vmem:[%s361] sm:$0xff]
        %v486 = vld [vmem:[%s361 + $0x8] sm:$0xff]
        %487 = vrot.lane.b32.xlu0 %v485, 1
        %v488 = vpop.permute.xlu0 %487
        %489 = vrot.lane.b32.xlu0 %v486, 1
        %v490 = vpop.permute.xlu0 %489
        %491 = vrot.lane.b32.xlu0 %v485, 127
        %v492 = vpop.permute.xlu0 %491
        %493 = vrot.lane.b32.xlu0 %v486, 127
        %v494 = vpop.permute.xlu0 %493
        %v495 = vsel %vm435, %v488, %v492
        %v496 = vsel %vm435, %v490, %v494
        %497 = vrot.lane.b32.xlu0 %v495, 2
        %v498 = vpop.permute.xlu0 %497
        %499 = vrot.lane.b32.xlu0 %v496, 2
        %v500 = vpop.permute.xlu0 %499
        %501 = vrot.lane.b32.xlu0 %v495, 126
        %v502 = vpop.permute.xlu0 %501
        %503 = vrot.lane.b32.xlu0 %v496, 126
        %v504 = vpop.permute.xlu0 %503
        %v505 = vsel %vm444, %v498, %v502
        %v506 = vsel %vm444, %v500, %v504
        %507 = vrot.lane.b32.xlu0 %v505, 4
        %v508 = vpop.permute.xlu0 %507
        %509 = vrot.lane.b32.xlu0 %v506, 4
        %v510 = vpop.permute.xlu0 %509
        %511 = vrot.lane.b32.xlu0 %v505, 124
        %v512 = vpop.permute.xlu0 %511
        %513 = vrot.lane.b32.xlu0 %v506, 124
        %v514 = vpop.permute.xlu0 %513
        %v515 = vsel %vm453, %v508, %v512
        %v516 = vsel %vm453, %v510, %v514
        %517 = vrot.lane.b32.xlu0 %v515, 8
        %v518 = vpop.permute.xlu0 %517
        %519 = vrot.lane.b32.xlu0 %v516, 8
        %v520 = vpop.permute.xlu0 %519
        %521 = vrot.lane.b32.xlu0 %v515, 120
        %v522 = vpop.permute.xlu0 %521
        %523 = vrot.lane.b32.xlu0 %v516, 120
        %v524 = vpop.permute.xlu0 %523
        %v525 = vsel %vm462, %v518, %v522
        %v526 = vsel %vm462, %v520, %v524
        %527 = vrot.lane.b32.xlu0 %v525, 16
        %v528 = vpop.permute.xlu0 %527
        %529 = vrot.lane.b32.xlu0 %v526, 16
        %v530 = vpop.permute.xlu0 %529
        %531 = vrot.lane.b32.xlu0 %v525, 112
        %v532 = vpop.permute.xlu0 %531
        %533 = vrot.lane.b32.xlu0 %v526, 112
        %v534 = vpop.permute.xlu0 %533
        %v535 = vsel %vm471, %v528, %v532
        %v536 = vsel %vm471, %v530, %v534
        %537 = vrot.lane.b32.xlu0 %v535, 32
        %v538 = vpop.permute.xlu0 %537
        %539 = vrot.lane.b32.xlu0 %v536, 32
        %v540 = vpop.permute.xlu0 %539
        %541 = vrot.lane.b32.xlu0 %v535, 96
        %v542 = vpop.permute.xlu0 %541
        %543 = vrot.lane.b32.xlu0 %v536, 96
        %v544 = vpop.permute.xlu0 %543
        %v545 = vsel %vm480, %v538, %v542
        %v546 = vsel %vm480, %v540, %v544
        %547 = vrot.lane.b32.xlu0 %v545, 64
        %v548 = vpop.permute.xlu0 %547
        %549 = vrot.lane.b32.xlu0 %v546, 64
        %v550 = vpop.permute.xlu0 %549
        %v551 = vld [vmem:[%s370] sm:$0xff]
        %v552 = vld [vmem:[%s370 + $0x8] sm:$0xff]
        %553 = vrot.lane.b32.xlu0 %v551, 1
        %v554 = vpop.permute.xlu0 %553
        %555 = vrot.lane.b32.xlu0 %v552, 1
        %v556 = vpop.permute.xlu0 %555
        %557 = vrot.lane.b32.xlu0 %v551, 127
        %v558 = vpop.permute.xlu0 %557
        %559 = vrot.lane.b32.xlu0 %v552, 127
        %v560 = vpop.permute.xlu0 %559
        %v561 = vsel %vm435, %v554, %v558
        %v562 = vsel %vm435, %v556, %v560
        %563 = vrot.lane.b32.xlu0 %v561, 2
        %v564 = vpop.permute.xlu0 %563
        %565 = vrot.lane.b32.xlu0 %v562, 2
        %v566 = vpop.permute.xlu0 %565
        %567 = vrot.lane.b32.xlu0 %v561, 126
        %v568 = vpop.permute.xlu0 %567
        %569 = vrot.lane.b32.xlu0 %v562, 126
        %v570 = vpop.permute.xlu0 %569
        %v571 = vsel %vm444, %v564, %v568
        %v572 = vsel %vm444, %v566, %v570
        %573 = vrot.lane.b32.xlu0 %v571, 4
        %v574 = vpop.permute.xlu0 %573
        %575 = vrot.lane.b32.xlu0 %v572, 4
        %v576 = vpop.permute.xlu0 %575
        %577 = vrot.lane.b32.xlu0 %v571, 124
        %v578 = vpop.permute.xlu0 %577
        %579 = vrot.lane.b32.xlu0 %v572, 124
        %v580 = vpop.permute.xlu0 %579
        %v581 = vsel %vm453, %v574, %v578
        %v582 = vsel %vm453, %v576, %v580
        %583 = vrot.lane.b32.xlu0 %v581, 8
        %v584 = vpop.permute.xlu0 %583
        %585 = vrot.lane.b32.xlu0 %v582, 8
        %v586 = vpop.permute.xlu0 %585
        %587 = vrot.lane.b32.xlu0 %v581, 120
        %v588 = vpop.permute.xlu0 %587
        %589 = vrot.lane.b32.xlu0 %v582, 120
        %v590 = vpop.permute.xlu0 %589
        %v591 = vsel %vm462, %v584, %v588
        %v592 = vsel %vm462, %v586, %v590
        %593 = vrot.lane.b32.xlu0 %v591, 16
        %v594 = vpop.permute.xlu0 %593
        %595 = vrot.lane.b32.xlu0 %v592, 16
        %v596 = vpop.permute.xlu0 %595
        %597 = vrot.lane.b32.xlu0 %v591, 112
        %v598 = vpop.permute.xlu0 %597
        %599 = vrot.lane.b32.xlu0 %v592, 112
        %v600 = vpop.permute.xlu0 %599
        %v601 = vsel %vm471, %v594, %v598
        %v602 = vsel %vm471, %v596, %v600
        %603 = vrot.lane.b32.xlu0 %v601, 32
        %v604 = vpop.permute.xlu0 %603
        %605 = vrot.lane.b32.xlu0 %v602, 32
        %v606 = vpop.permute.xlu0 %605
        %607 = vrot.lane.b32.xlu0 %v601, 96
        %v608 = vpop.permute.xlu0 %607
        %609 = vrot.lane.b32.xlu0 %v602, 96
        %v610 = vpop.permute.xlu0 %609
        %v611 = vsel %vm480, %v604, %v608
        %v612 = vsel %vm480, %v606, %v610
        %613 = vrot.lane.b32.xlu0 %v611, 64
        %v614 = vpop.permute.xlu0 %613
        %615 = vrot.lane.b32.xlu0 %v612, 64
        %v616 = vpop.permute.xlu0 %615
        // Predicated region
        $region45: #{_paf_hflip_forward.1} parent=31 // pred_check
          %p617 = pneg %p424
        $region46: #{_paf_hflip_forward.1} parent=31 // pred_check_branch
          %619 = sbr.rel (%p617) target = $region48
        $region47: #{_paf_hflip_forward.1} parent=31 // pred_region
          %v620 = vsub.f32 0.0, %v614
          %621 = vst [vmem:[%s409] sm:$0xff] %v620
          %v622 = vsub.f32 0.0, %v548
          %623 = vst [vmem:[%s416] sm:$0xff] %v622
          %624 = vst [vmem:[%s409 + $0x8] sm:$0xff] %v616
          %625 = vst [vmem:[%s416 + $0x8] sm:$0xff] %v550
        $region48: #{_paf_hflip_forward.1} parent=31 // pred_fallthru
          _
        %p626 = scmp.eq.s32.totalorder %s423, 0
        // Predicated region
        $region49: #{_paf_hflip_forward.1} parent=31 // pred_check
          %p627 = pneg %p626
        $region50: #{_paf_hflip_forward.1} parent=31 // pred_check_branch
          %629 = sbr.rel (%p627) target = $region52
        $region51: #{_paf_hflip_forward.1} parent=31 // pred_region
          %v630 = vsub.f32 0.0, %v548
          %631 = vst [vmem:[%s409] sm:$0xff] %v630
          %v632 = vsub.f32 0.0, %v614
          %633 = vst [vmem:[%s416] sm:$0xff] %v632
          %634 = vst [vmem:[%s409 + $0x8] sm:$0xff] %v550
          %635 = vst [vmem:[%s416 + $0x8] sm:$0xff] %v616
        $region52: #{_paf_hflip_forward.1} parent=31 // pred_fallthru
          _
        %s636 = sand.u32 %s174, 1
        %s637 = scalar_lea.sflag [#allocation7], %s636
        %s638 = sand.u32 %s174, 1
        %s639 = smul.addr %s638, 8
        %s640 = scalar_lea.vmem [#allocation11], %s639
        %s641 = sand.u32 %s41, 1
        %s642 = scalar_lea.sflag [#allocation13], %s641
        %s643 = sand.u32 %s204, 1
        %s644 = smul.addr %s643, 16
        %s645 = scalar_lea.vmem [#allocation12], %s644
        %s646 = sand.u32 %s41, 1
        %s647 = scalar_lea.sflag [#allocation13], %s646
        %s648 = sand.u32 %s234, 1
        %s649 = smul.addr %s648, 16
        %s650 = scalar_lea.vmem [#allocation14], %s649
        // Predicated region
        $region53: #{_paf_hflip_forward.1} parent=31 // pred_check
          %p651 = pneg %p184
        $region54: #{_paf_hflip_forward.1} parent=31 // pred_check_branch
          %653 = sbr.rel (%p651) target = $region56
        $region55: #{_paf_hflip_forward.1} parent=31 // pred_region
          %s655 = ssub.s32 128, 128
          %656 = vsyncadd %s637, %s655
          %s657 = sadd.s32 %s48, %s47
          %s658 = smul.addr %s46, 5
          %s659 = sadd.s32 %s657, %s658
          %s660 = smul.addr %s659, 128
          %s661 = scalar_lea.hbm %s5, %s660
          %s663 = sshll.u32 %s640, 4
          %s664 = int_to_ptr.vmem [resolvable:$true] %s663
          %666 = dma.vmem_to_hbm [thread:$0]  %s664, 128, %s661, %s637
        $region56: #{_paf_hflip_forward.1} parent=31 // pred_fallthru
          _
        // Predicated region
        $region57: #{_paf_hflip_forward.1} parent=31 // pred_check
          %p667 = pneg %p214
        $region58: #{_paf_hflip_forward.1} parent=31 // pred_check_branch
          %669 = sbr.rel (%p667) target = $region60
        $region59: #{_paf_hflip_forward.1} parent=31 // pred_region
          %s671 = ssub.s32 256, 256
          %672 = vsyncadd %s642, %s671
          %s673 = smul.addr %s47, 2
          %s674 = sadd.s32 %s48, %s673
          %s675 = smul.addr %s46, 10
          %s676 = sadd.s32 %s674, %s675
          %s677 = smul.addr %s676, 128
          %s678 = scalar_lea.hbm %s6, %s677
          %s679 = sshll.u32 %s645, 4
          %s680 = int_to_ptr.vmem [resolvable:$true] %s679
          %685 = dma.vmem_to_hbm [thread:$0]  %s680, 256, %s678, %s642, 128, 128, 8
        $region60: #{_paf_hflip_forward.1} parent=31 // pred_fallthru
          _
        // Predicated region
        $region61: #{_paf_hflip_forward.1} parent=31 // pred_check
          %p686 = pneg %p244
        $region62: #{_paf_hflip_forward.1} parent=31 // pred_check_branch
          %688 = sbr.rel (%p686) target = $region64
        $region63: #{_paf_hflip_forward.1} parent=31 // pred_region
          %s690 = ssub.s32 256, 256
          %691 = vsyncadd %s647, %s690
          %s692 = smul.addr %s47, 2
          %s693 = sadd.s32 %s48, %s692
          %s694 = smul.addr %s46, 10
          %s695 = sadd.s32 %s693, %s694
          %s696 = smul.addr %s695, 128
          %s697 = scalar_lea.hbm %s7, %s696
          %s698 = sshll.u32 %s650, 4
          %s699 = int_to_ptr.vmem [resolvable:$true] %s698
          %704 = dma.vmem_to_hbm [thread:$0]  %s699, 256, %s697, %s647, 128, 128, 8
        $region64: #{_paf_hflip_forward.1} parent=31 // pred_fallthru
          _
      $region32: #{_paf_hflip_forward.1} parent=5 // pred_fallthru
        _
      %p705 = scmp.le.s32.totalorder 2, %s36
      // Predicated region
      $region65: #{_paf_hflip_forward.1} parent=5 // pred_check
        %p706 = pneg %p705
      $region66: #{_paf_hflip_forward.1} parent=5 // pred_check_branch
        %708 = sbr.rel (%p706) target = $region68
      $region67: #{_paf_hflip_forward.1} parent=5 // pred_region
        %s709 = ssub.s32 %s36, 2
        // Predicated region
        $region69: #{_paf_hflip_forward.1} parent=67 // pred_check
          %p710 = pneg %p190
        $region70: #{_paf_hflip_forward.1} parent=67 // pred_check_branch
          %712 = sbr.rel (%p710) target = $region72
        $region71: #{_paf_hflip_forward.1} parent=67 // pred_region
          %s713 = sand.u32 %s175, 1
          %s714 = scalar_lea.sflag [#allocation7], %s713
          %s715 = sand.u32 %s175, 1
          %s716 = smul.addr %s715, 8
          %s717 = scalar_lea.vmem [#allocation11], %s716
          %718 = dma.done %s714, 128
        $region72: #{_paf_hflip_forward.1} parent=67 // pred_fallthru
          _
        // Predicated region
        $region73: #{_paf_hflip_forward.1} parent=67 // pred_check
          %p719 = pneg %p220
        $region74: #{_paf_hflip_forward.1} parent=67 // pred_check_branch
          %721 = sbr.rel (%p719) target = $region76
        $region75: #{_paf_hflip_forward.1} parent=67 // pred_region
          %s722 = sand.u32 %s42, 1
          %s723 = scalar_lea.sflag [#allocation13], %s722
          %s724 = sand.u32 %s205, 1
          %s725 = smul.addr %s724, 16
          %s726 = scalar_lea.vmem [#allocation12], %s725
          %727 = dma.done %s723, 256
        $region76: #{_paf_hflip_forward.1} parent=67 // pred_fallthru
          _
        // Predicated region
        $region77: #{_paf_hflip_forward.1} parent=67 // pred_check
          %p728 = pneg %p250
        $region78: #{_paf_hflip_forward.1} parent=67 // pred_check_branch
          %730 = sbr.rel (%p728) target = $region80
        $region79: #{_paf_hflip_forward.1} parent=67 // pred_region
          %s731 = sand.u32 %s42, 1
          %s732 = scalar_lea.sflag [#allocation13], %s731
          %s733 = sand.u32 %s235, 1
          %s734 = smul.addr %s733, 16
          %s735 = scalar_lea.vmem [#allocation14], %s734
          %736 = dma.done %s732, 256
        $region80: #{_paf_hflip_forward.1} parent=67 // pred_fallthru
          _
      $region68: #{_paf_hflip_forward.1} parent=5 // pred_fallthru
        _
    $region6: #{_paf_hflip_forward.1} parent=1 // loop_footer
      %s40 = sadd.s32 1, %s36
    $region7: #{_paf_hflip_forward.1} parent=1 // loop_footer_branch
      %35 = sbr.rel target = $region3
    $region8: #{_paf_hflip_forward.1} parent=1 // loop_exit
      _
    %737 = vsyncpa [#allocation6], 1
    %s738 = scalar_lea.sflag [#allocation6], 1
    %739 = vsyncpa %s738, 1
    %740 = vsyncpa [#allocation9], 1
    %s741 = scalar_lea.sflag [#allocation9], 1
    %742 = vsyncpa %s741, 1
    %743 = vsyncpa [#allocation7], 1
    %s744 = scalar_lea.sflag [#allocation7], 1
    %745 = vsyncpa %s744, 1
    %746 = vsyncpa [#allocation13], 1
    %s747 = scalar_lea.sflag [#allocation13], 1
    %748 = vsyncpa %s747, 1

</llo_original>
